<compile_context>
chip_gen: v7x
topology: tpu7x:2x2x1
jax: 0.10.0
libtpu: 0.0.40
codegen_flags: <defaults>
</compile_context>

<pallas_src>
import functools

import jax
import jax.numpy as jnp
from jax import lax
from jax.experimental import pallas as pl
from jax.experimental.pallas import tpu as pltpu


def _round_up(x, m):
    return (x + m - 1) // m * m


def _conv1d_kernel(x_ref, w_ref, o_ref, *, ksize, pad):
    # x_ref: (1, L, Hp)   one batch element, channels-last, Hp % 128 == 0
    # w_ref: (K*Hp, Hp)   fused im2col weight; row (k*Hp + ci) -> tap k, in-ch ci
    # o_ref: (1, L, Hp)
    L = x_ref.shape[1]
    x = x_ref[0]                                            # (L, Hp)

    # Sequence-position index for masking the "same"-padding boundaries.
    t = lax.broadcasted_iota(jnp.int32, x.shape, 0)

    # Build the im2col operand (L, K*Hp): tap block k holds x[t + k - pad, :],
    # zero outside [0, L).  Shifts ride the XLU via pltpu.roll; masking is VPU.
    taps = []
    for k in range(ksize):
        s = k - pad                                         # static source offset
        if s == 0:
            xs = x
        else:
            xs = pltpu.roll(x, shift=(-s) % L, axis=0)      # xs[t] == x[(t+s) % L]
            valid = (t + s >= 0) & (t + s < L)
            xs = jnp.where(valid, xs, jnp.zeros_like(xs))
        taps.append(xs)
    im2col = jnp.concatenate(taps, axis=-1)                 # (L, K*Hp)

    # Single fused MXU matmul, f32 accumulation.
    acc = jnp.dot(im2col, w_ref[...], preferred_element_type=jnp.float32)
    o_ref[0] = acc.astype(o_ref.dtype)


def cnn_forward(x, weight, *, compute_dtype=None):
    """Pallas equivalent of CNN.forward.

    x:       (B, L, H)        activations (channels-last)
    weight:  (H_out, H_in, K) Conv1d weight, PyTorch layout
    compute_dtype: optional MXU operand dtype (e.g. jnp.bfloat16 on v6e/v7x);
                   accumulation is always f32, output keeps x.dtype.
    returns  (B, L, H)
    """
    B, L, H = x.shape
    H_out, H_in, K = weight.shape
    assert H_in == H and H_out == H, "only H_in == H_out == hidden_size supported"
    assert K % 2 == 1, "even kernel sizes change the output length in PyTorch; unsupported"
    pad = (K - 1) // 2

    out_dtype = x.dtype
    cdt = jnp.dtype(compute_dtype) if compute_dtype is not None else x.dtype

    # Lane-dense hidden dim (multiple of 128); no-op when H is already aligned.
    Hp = _round_up(H, 128)

    # Weights: (out, in, K) -> (K, in, out); zero-pad channels; fuse taps into
    # a single (K*Hp, Hp) matrix whose row order matches the im2col concat.
    w_taps = jnp.transpose(weight, (2, 1, 0))               # (K, H_in, H_out)
    if Hp != H:
        w_taps = jnp.pad(w_taps, ((0, 0), (0, Hp - H), (0, Hp - H)))
        x = jnp.pad(x, ((0, 0), (0, 0), (0, Hp - H)))
    w2 = w_taps.reshape(K * Hp, Hp).astype(cdt)
    x_in = x.astype(cdt)

    kernel = functools.partial(_conv1d_kernel, ksize=K, pad=pad)

    itemsize = jnp.dtype(cdt).itemsize
    cost = pl.CostEstimate(
        flops=2 * B * L * Hp * Hp * K,
        transcendentals=0,
        bytes_accessed=(B * L * Hp * itemsize            # x
                        + K * Hp * Hp * itemsize         # weights
                        + B * L * Hp * jnp.dtype(out_dtype).itemsize),  # out
    )

    out = pl.pallas_call(
        kernel,
        out_shape=jax.ShapeDtypeStruct((B, L, Hp), out_dtype),
        grid_spec=pltpu.PrefetchScalarGridSpec(
            num_scalar_prefetch=0,
            grid=(B,),
            in_specs=[
                pl.BlockSpec((1, L, Hp), lambda b: (b, 0, 0)),
                pl.BlockSpec((K * Hp, Hp), lambda b: (0, 0)),
            ],
            out_specs=pl.BlockSpec((1, L, Hp), lambda b: (b, 0, 0)),
        ),
        compiler_params=pltpu.CompilerParams(
            dimension_semantics=("parallel",),
        ),
        cost_estimate=cost,
    )(x_in, w2)

    if Hp != H:
        out = out[..., :H]
    return out


def cnn_reference(x, weight):
    """Pure-JAX reference matching nn.Conv1d(H, H, K, bias=False, padding=(K-1)//2)."""
    x_ncw = jnp.transpose(x, (0, 2, 1))                     # (B, H, L)
    pad = (weight.shape[2] - 1) // 2
    y = lax.conv_general_dilated(
        x_ncw, weight,
        window_strides=(1,), padding=[(pad, pad)],
        dimension_numbers=("NCH", "OIH", "NCH"),
    )
    return jnp.transpose(y, (0, 2, 1))                      # (B, L, H)


if __name__ == "__main__":
    # config = {'hidden_size': 32, 'kernel_size': 3}
    B, L, H, K = 2, 8, 32, 3

    key = jax.random.PRNGKey(0)
    kx, kw = jax.random.split(key)
    x = jax.random.normal(kx, (B, L, H), dtype=jnp.float32)
    # Deterministic synthetic Conv1d weight, PyTorch layout (out_ch, in_ch, K).
    weight = jax.random.normal(kw, (H, H, K), dtype=jnp.float32) * 0.1

    ref = cnn_reference(x, weight)

    # f32 path: exact module semantics.
    out = jax.block_until_ready(cnn_forward(x, weight))
    assert out.shape == (B, L, H)
    assert jnp.allclose(out, ref, atol=1e-4, rtol=1e-4)

    # bf16-operand path (v6e/v7x MXU throughput), f32 accumulation.
    out_bf16 = jax.block_until_ready(cnn_forward(x, weight, compute_dtype=jnp.bfloat16))
    assert out_bf16.shape == (B, L, H)
    assert jnp.allclose(out_bf16, ref, atol=5e-2, rtol=5e-2)

    print("KERNEL_OK")
</pallas_src>

<mosaic_0001>
module attributes {stable_mosaic.version = 11 : i64} {
  func.func @_conv1d_kernel(%arg0: i32, %arg1: memref<1x8x128xf32, #tpu.memory_space<vmem>>, %arg2: memref<384x128xf32, #tpu.memory_space<vmem>>, %arg3: memref<1x8x128xf32, #tpu.memory_space<vmem>>) attributes {dimension_semantics = [#tpu.dimension_semantics<parallel>], iteration_bounds = array<i64: 2>, scalar_prefetch = 0 : i64, scratch_operands = 0 : i64, tpu.core_type = #tpu.core_type<tc>, window_params = [{transform_indices = @transform_0, window_bounds = array<i64: 1, 8, 128>}, {pipeline_mode = #tpu.pipeline_mode<synchronous>, transform_indices = @transform_1, window_bounds = array<i64: 384, 128>}, {transform_indices = @transform_2, window_bounds = array<i64: 1, 8, 128>}]} {
    %c0 = arith.constant 0 : index
    %c0_0 = arith.constant 0 : index
    %c0_1 = arith.constant 0 : index
    %0 = vector.load %arg1[%c0, %c0_0, %c0_1] : memref<1x8x128xf32, #tpu.memory_space<vmem>>, vector<1x8x128xf32>
    %1 = vector.shape_cast %0 : vector<1x8x128xf32> to vector<8x128xf32>
    %2 = tpu.iota {dimensions = array<i32: 0>} : vector<8x128xi32>
    %c1_i32 = arith.constant 1 : i32
    %3 = tpu.dynamic_rotate %1 by %c1_i32 dim 0 : vector<8x128xf32>, i32 -> vector<8x128xf32>
    %c-1_i32 = arith.constant -1 : i32
    %4 = vector.broadcast %c-1_i32 : i32 to vector<8x128xi32>
    %5 = arith.addi %2, %4 : vector<8x128xi32>
    %c0_i32 = arith.constant 0 : i32
    %6 = vector.broadcast %c0_i32 : i32 to vector<8x128xi32>
    %7 = arith.cmpi sge, %5, %6 : vector<8x128xi32>
    %c-1_i32_2 = arith.constant -1 : i32
    %8 = vector.broadcast %c-1_i32_2 : i32 to vector<8x128xi32>
    %9 = arith.addi %2, %8 : vector<8x128xi32>
    %c8_i32 = arith.constant 8 : i32
    %10 = vector.broadcast %c8_i32 : i32 to vector<8x128xi32>
    %11 = arith.cmpi slt, %9, %10 : vector<8x128xi32>
    %12 = arith.andi %7, %11 : vector<8x128xi1>
    %cst = arith.constant 0.000000e+00 : f32
    %13 = vector.broadcast %cst : f32 to vector<8x128xf32>
    %14 = arith.select %12, %3, %13 : vector<8x128xi1>, vector<8x128xf32>
    %c7_i32 = arith.constant 7 : i32
    %15 = tpu.dynamic_rotate %1 by %c7_i32 dim 0 : vector<8x128xf32>, i32 -> vector<8x128xf32>
    %c1_i32_3 = arith.constant 1 : i32
    %16 = vector.broadcast %c1_i32_3 : i32 to vector<8x128xi32>
    %17 = arith.addi %2, %16 : vector<8x128xi32>
    %c0_i32_4 = arith.constant 0 : i32
    %18 = vector.broadcast %c0_i32_4 : i32 to vector<8x128xi32>
    %19 = arith.cmpi sge, %17, %18 : vector<8x128xi32>
    %c1_i32_5 = arith.constant 1 : i32
    %20 = vector.broadcast %c1_i32_5 : i32 to vector<8x128xi32>
    %21 = arith.addi %2, %20 : vector<8x128xi32>
    %c8_i32_6 = arith.constant 8 : i32
    %22 = vector.broadcast %c8_i32_6 : i32 to vector<8x128xi32>
    %23 = arith.cmpi slt, %21, %22 : vector<8x128xi32>
    %24 = arith.andi %19, %23 : vector<8x128xi1>
    %cst_7 = arith.constant 0.000000e+00 : f32
    %25 = vector.broadcast %cst_7 : f32 to vector<8x128xf32>
    %26 = arith.select %24, %15, %25 : vector<8x128xi1>, vector<8x128xf32>
    %27 = tpu.concatenate %14, %1, %26 in 1 : vector<8x128xf32>, vector<8x128xf32>, vector<8x128xf32> -> vector<8x384xf32>
    %c0_8 = arith.constant 0 : index
    %c0_9 = arith.constant 0 : index
    %28 = vector.load %arg2[%c0_8, %c0_9] : memref<384x128xf32, #tpu.memory_space<vmem>>, vector<384x128xf32>
    %cst_10 = arith.constant dense<0.000000e+00> : vector<8x128xf32>
    %29 = tpu.matmul %27, %28, %cst_10 {dimension_numbers = #tpu.dot_dimension_numbers<[1], [0], [0], [1], [0, 0, 1, 1], [], []>} : vector<8x384xf32>, vector<384x128xf32>, vector<8x128xf32> -> vector<8x128xf32>
    %c0_11 = arith.constant 0 : index
    %c0_12 = arith.constant 0 : index
    %c0_13 = arith.constant 0 : index
    %30 = vector.load %arg3[%c0_11, %c0_12, %c0_13] : memref<1x8x128xf32, #tpu.memory_space<vmem>>, vector<1x8x128xf32>
    %31 = vector.shape_cast %30 : vector<1x8x128xf32> to vector<8x128xf32>
    %32 = vector.shape_cast %29 : vector<8x128xf32> to vector<1x8x128xf32>
    tpu.vector_store %arg3[%c0_11, %c0_12, %c0_13], %32 {strides = array<i32>} : memref<1x8x128xf32, #tpu.memory_space<vmem>>, vector<1x8x128xf32>,
    return
  }
  func.func @transform_0(%arg0: i32) -> (i32, i32, i32) {
    %c0_i32 = arith.constant 0 : i32
    %c0_i32_0 = arith.constant 0 : i32
    %c0_i32_1 = arith.constant 0 : i32
    return %arg0, %c0_i32, %c0_i32_0 : i32, i32, i32
  }
  func.func @transform_1(%arg0: i32) -> (i32, i32) {
    %c0_i32 = arith.constant 0 : i32
    %c0_i32_0 = arith.constant 0 : i32
    %c0_i32_1 = arith.constant 0 : i32
    return %c0_i32, %c0_i32_0 : i32, i32
  }
  func.func @transform_2(%arg0: i32) -> (i32, i32, i32) {
    %c0_i32 = arith.constant 0 : i32
    %c0_i32_0 = arith.constant 0 : i32
    %c0_i32_1 = arith.constant 0 : i32
    return %arg0, %c0_i32, %c0_i32_0 : i32, i32, i32
  }
}

</mosaic_0001>

<llo_original>
// kernel: tpu_custom_call.1
$region0: #{tpu_custom_call.1}
  #allocation0 [shape = 'u32[]', space=smem, size = 0x4, offset = 0x4, fixed_abs, tag = 'smem constant byte address 0x4 - core index']
  #allocation1 [shape = 'u32[144,128]{1,0:T(1,128)}', space=vmem, size = 0x12000, scoped, tag = 'internal scratch']
  %s0 = inlined_call_operand.hbm [shape: f32[2,8,128], index: 0, kind: input, shape index: {}]
  %s1 = inlined_call_operand.hbm [shape: f32[384,128], index: 1, kind: input, shape index: {}]
  %s2 = inlined_call_operand.hbm [shape: f32[2,8,128], index: 2, kind: output, shape index: {}]
  %s3 = sld [smem:[#allocation0]]
  $region49: #{tpu_custom_call.1} parent=0
    _
  %s5 = ssub.s32 1, %s3
  %s6 = scalar_select 0, %s5, %s3
  $region1: #{tpu_custom_call.1} parent=0
    #allocation2 [shape = 'u8[8192]{0}', space=vmem, size = 0x2000, scoped, tag = 'input window, operand 0']
    #allocation3 [shape = 's32[2]{0}', space=sflag, size = 0x8, scoped, tag = 'scoped memory for tpu_custom_call.1']
    #allocation4 [shape = 's32[2]{0}', space=sflag, size = 0x8, scoped, tag = 'scoped memory for tpu_custom_call.1']
    #allocation5 [shape = 'u8[196608]{0}', space=vmem, size = 0x30000, scoped, tag = 'input window, operand 1, single buffered']
    #allocation6 [shape = 's32[1]{0}', space=sflag, size = 0x4, scoped, tag = 'scoped memory for tpu_custom_call.1']
    #allocation7 [shape = 'u8[8192]{0}', space=vmem, size = 0x2000, scoped, tag = 'output window, operand 0']
    %7 = vsyncpa [#allocation3], 0
    %s8 = scalar_lea.sflag [#allocation3], 1
    %9 = vsyncpa %s8, 0
    %10 = vsyncpa [#allocation6], 0
    %11 = vsyncpa [#allocation4], 0
    %s12 = scalar_lea.sflag [#allocation4], 1
    %13 = vsyncpa %s12, 0
    loop: start=0, step=1, limit=4
    $region2: #{tpu_custom_call.1} parent=1 // loop_pre_header
      _
    $region3: #{tpu_custom_call.1} parent=1 // loop_header
      %s15 = sphi 0, %s19
      %p16 = scmp.ge.s32.totalorder %s15, 4
      %s25 = sphi 0, %s27
      %s28 = sphi 0, %s25
      %s29 = sphi 0, %s28
      %s45 = sphi 0, %s29
      %s49 = sphi 0, %s49
      %s51 = sphi 0, %s49
      %s52 = sphi 0, %s51
      %s66 = sphi 0, %s52
      %s72 = sphi 0, %s74
      %s75 = sphi 0, %s72
      %s76 = sphi 0, %s75
      %s92 = sphi 0, %s76
    $region4: #{tpu_custom_call.1} parent=1 // loop_header_branch
      %18 = sbr.rel (%p16) target = $region8
    $region5: #{tpu_custom_call.1} parent=1 // loop_body
      %s20 = ssub.s32 %s15, 1
      %s21 = ssub.s32 %s15, 2
      %s22 = sadd.s32 %s15, 1
      %s23 = ssub.s32 %s15, %s22
      %p24 = scmp.eq.s32.totalorder %s23, 0
      %s26 = sadd.s32 %s25, 1
      %s27 = scalar_select %p24, %s25, %s26
      %p30 = pneg %p24
      %p31 = scmp.eq.s32.totalorder %s15, 1
      %p32 = por %p30, %p31
      %p33 = scmp.ne.s32.totalorder %s25, %s28
      %p34 = scmp.eq.s32.totalorder %s15, 0
      %p35 = por %p33, %p34
      %p36 = scmp.ne.s32.totalorder %s25, %s28
      %p37 = scmp.eq.s32.totalorder %s20, 1
      %p38 = por %p36, %p37
      %p39 = scmp.ne.s32.totalorder %s28, %s29
      %p40 = scmp.eq.s32.totalorder %s20, 0
      %p41 = por %p39, %p40
      %p42 = scmp.ne.s32.totalorder %s28, %s29
      %p43 = scmp.eq.s32.totalorder %s21, 1
      %p44 = por %p42, %p43
      %p46 = scmp.ne.s32.totalorder %s29, %s45
      %p47 = scmp.eq.s32.totalorder %s21, 0
      %p48 = por %p46, %p47
      %s50 = sadd.s32 %s49, 1
      %p53 = scmp.eq.s32.totalorder %s15, 1
      %p54 = scmp.ne.s32.totalorder %s49, %s51
      %p55 = scmp.eq.s32.totalorder %s15, 0
      %p56 = por %p54, %p55
      %p57 = scmp.ne.s32.totalorder %s49, %s51
      %p58 = scmp.eq.s32.totalorder %s20, 1
      %p59 = por %p57, %p58
      %p60 = scmp.ne.s32.totalorder %s51, %s52
      %p61 = scmp.eq.s32.totalorder %s20, 0
      %p62 = por %p60, %p61
      %p63 = scmp.ne.s32.totalorder %s51, %s52
      %p64 = scmp.eq.s32.totalorder %s21, 1
      %p65 = por %p63, %p64
      %p67 = scmp.ne.s32.totalorder %s52, %s66
      %p68 = scmp.eq.s32.totalorder %s21, 0
      %p69 = por %p67, %p68
      %s70 = ssub.s32 %s15, %s22
      %p71 = scmp.eq.s32.totalorder %s70, 0
      %s73 = sadd.s32 %s72, 1
      %s74 = scalar_select %p71, %s72, %s73
      %p77 = pneg %p71
      %p78 = scmp.eq.s32.totalorder %s15, 1
      %p79 = por %p77, %p78
      %p80 = scmp.ne.s32.totalorder %s72, %s75
      %p81 = scmp.eq.s32.totalorder %s15, 0
      %p82 = por %p80, %p81
      %p83 = scmp.ne.s32.totalorder %s72, %s75
      %p84 = scmp.eq.s32.totalorder %s20, 1
      %p85 = por %p83, %p84
      %p86 = scmp.ne.s32.totalorder %s75, %s76
      %p87 = scmp.eq.s32.totalorder %s20, 0
      %p88 = por %p86, %p87
      %p89 = scmp.ne.s32.totalorder %s75, %s76
      %p90 = scmp.eq.s32.totalorder %s21, 1
      %p91 = por %p89, %p90
      %p93 = scmp.ne.s32.totalorder %s76, %s92
      %p94 = scmp.eq.s32.totalorder %s21, 0
      %p95 = por %p93, %p94
      %p96 = scmp.le.s32.totalorder 1, %s15
      %p97 = scmp.lt.s32.totalorder %s15, 3
      %p98 = pnand %p96, %p97
      %p99 = pneg %p98
      // Predicated region
      $region9: #{tpu_custom_call.1} parent=5 // pred_check
        _
      $region10: #{tpu_custom_call.1} parent=5 // pred_check_branch
        %101 = sbr.rel (%p98) target = $region12
      $region11: #{tpu_custom_call.1} parent=5 // pred_region
        %s102 = ssub.s32 %s15, 1
        // Predicated region
        $region13: #{tpu_custom_call.1} parent=11 // pred_check
          %p103 = pneg %p62
        $region14: #{tpu_custom_call.1} parent=11 // pred_check_branch
          %105 = sbr.rel (%p103) target = $region16
        $region15: #{tpu_custom_call.1} parent=11 // pred_region
          %s107 = ssub.s32 6144, 6144
          %108 = vsyncadd [#allocation6], %s107
          %s109 = sshll.u32 [#allocation5], 4
          %s110 = int_to_ptr.vmem [resolvable:$true] %s109
          %115 = dma.hbm_to_vmem [thread:$0]  %s1, 6144, %s110, [#allocation6], 128, 128, 8
        $region16: #{tpu_custom_call.1} parent=11 // pred_fallthru
          _
      $region12: #{tpu_custom_call.1} parent=5 // pred_fallthru
        _
      %p116 = scmp.lt.s32.totalorder %s15, 2
      // Predicated region
      $region17: #{tpu_custom_call.1} parent=5 // pred_check
        %p117 = pneg %p116
      $region18: #{tpu_custom_call.1} parent=5 // pred_check_branch
        %119 = sbr.rel (%p117) target = $region20
      $region19: #{tpu_custom_call.1} parent=5 // pred_region
        // Predicated region
        $region21: #{tpu_custom_call.1} parent=19 // pred_check
          %p120 = pneg %p35
        $region22: #{tpu_custom_call.1} parent=19 // pred_check_branch
          %122 = sbr.rel (%p120) target = $region24
        $region23: #{tpu_custom_call.1} parent=19 // pred_region
          %s123 = sand.u32 %s25, 1
          %s124 = scalar_lea.sflag [#allocation3], %s123
          %s125 = sand.u32 %s25, 1
          %s126 = smul.addr %s125, 8
          %s127 = scalar_lea.vmem [#allocation2], %s126
          %s129 = ssub.s32 128, 128
          %130 = vsyncadd %s124, %s129
          %s131 = smul.addr %s15, 128
          %s132 = scalar_lea.hbm %s0, %s131
          %s134 = sshll.u32 %s127, 4
          %s135 = int_to_ptr.vmem [resolvable:$true] %s134
          %137 = dma.hbm_to_vmem [thread:$0]  %s132, 128, %s135, %s124
        $region24: #{tpu_custom_call.1} parent=19 // pred_fallthru
          _
      $region20: #{tpu_custom_call.1} parent=5 // pred_fallthru
        _
      %p138 = scmp.le.s32.totalorder 1, %s15
      %p139 = scmp.lt.s32.totalorder %s15, 3
      %p140 = pnand %p138, %p139
      %p141 = pneg %p140
      // Predicated region
      $region25: #{tpu_custom_call.1} parent=5 // pred_check
        _
      $region26: #{tpu_custom_call.1} parent=5 // pred_check_branch
        %143 = sbr.rel (%p140) target = $region28
      $region27: #{tpu_custom_call.1} parent=5 // pred_region
        %s144 = ssub.s32 %s15, 1
        %s145 = sand.u32 %s28, 1
        %s146 = scalar_lea.sflag [#allocation3], %s145
        %s147 = sand.u32 %s28, 1
        %s148 = smul.addr %s147, 8
        %s149 = scalar_lea.vmem [#allocation2], %s148
        // Predicated region
        $region29: #{tpu_custom_call.1} parent=27 // pred_check
          %p150 = pneg %p41
        $region30: #{tpu_custom_call.1} parent=27 // pred_check_branch
          %152 = sbr.rel (%p150) target = $region32
        $region31: #{tpu_custom_call.1} parent=27 // pred_region
          %153 = dma.done %s146, 128
        $region32: #{tpu_custom_call.1} parent=27 // pred_fallthru
          _
        // Predicated region
        $region33: #{tpu_custom_call.1} parent=27 // pred_check
          %p154 = pneg %p62
        $region34: #{tpu_custom_call.1} parent=27 // pred_check_branch
          %156 = sbr.rel (%p154) target = $region36
        $region35: #{tpu_custom_call.1} parent=27 // pred_region
          %157 = dma.done [#allocation6], 6144
        $region36: #{tpu_custom_call.1} parent=27 // pred_fallthru
          _
        %s158 = sand.u32 %s28, 1
        %s159 = scalar_lea.sflag [#allocation3], %s158
        %s160 = sand.u32 %s28, 1
        %s161 = smul.addr %s160, 8
        %s162 = scalar_lea.vmem [#allocation2], %s161
        %p163 = pneg %p41
        %p164 = pneg %p38
        %p165 = pneg %p62
        %p166 = pneg %p59
        %p167 = pneg %p88
        %p168 = pneg %p85
        %s169 = sand.u32 %s75, 1
        %s170 = scalar_lea.sflag [#allocation4], %s169
        %s171 = sand.u32 %s75, 1
        %s172 = smul.addr %s171, 8
        %s173 = scalar_lea.vmem [#allocation7], %s172
        %v174 = vld [vmem:[%s149] sm:$0xff]
        %v175 = vlaneseq
        %v176 = vshrl.u32 %v175, 7
        %v177 = vrot.slane %v174, 7
        %v178 = vadd.s32 %v176, 4294967295
        %vm179 = vcmp.ge.s32.totalorder %v178, 0
        %vm180 = vcmp.lt.s32.totalorder %v178, 8
        %vm181 = vmand %vm179, %vm180
        %v182 = vsel %vm181, %v177, 0.0
        %v183 = vrot.slane %v174, 1
        %v184 = vadd.s32 %v176, 1
        %vm185 = vcmp.ge.s32.totalorder %v184, 0
        %vm186 = vcmp.lt.s32.totalorder %v184, 8
        %vm187 = vmand %vm185, %vm186
        %v188 = vsel %vm187, %v183, 0.0
        %v189 = vld [vmem:[#allocation5] sm:$0xff]
        %v190 = vld [vmem:[#allocation5 + $0x8] sm:$0xff]
        %v191 = vld [vmem:[#allocation5 + $0x10] sm:$0xff]
        %v192 = vld [vmem:[#allocation5 + $0x18] sm:$0xff]
        %v193 = vld [vmem:[#allocation5 + $0x20] sm:$0xff]
        %v194 = vld [vmem:[#allocation5 + $0x28] sm:$0xff]
        %v195 = vld [vmem:[#allocation5 + $0x30] sm:$0xff]
        %v196 = vld [vmem:[#allocation5 + $0x38] sm:$0xff]
        %v197 = vld [vmem:[#allocation5 + $0x40] sm:$0xff]
        %v198 = vld [vmem:[#allocation5 + $0x48] sm:$0xff]
        %v199 = vld [vmem:[#allocation5 + $0x50] sm:$0xff]
        %v200 = vld [vmem:[#allocation5 + $0x58] sm:$0xff]
        %v201 = vld [vmem:[#allocation5 + $0x60] sm:$0xff]
        %v202 = vld [vmem:[#allocation5 + $0x68] sm:$0xff]
        %v203 = vld [vmem:[#allocation5 + $0x70] sm:$0xff]
        %v204 = vld [vmem:[#allocation5 + $0x78] sm:$0xff]
        %v205 = vld [vmem:[#allocation5 + $0x80] sm:$0xff]
        %v206 = vld [vmem:[#allocation5 + $0x88] sm:$0xff]
        %v207 = vld [vmem:[#allocation5 + $0x90] sm:$0xff]
        %v208 = vld [vmem:[#allocation5 + $0x98] sm:$0xff]
        %v209 = vld [vmem:[#allocation5 + $0xa0] sm:$0xff]
        %v210 = vld [vmem:[#allocation5 + $0xa8] sm:$0xff]
        %v211 = vld [vmem:[#allocation5 + $0xb0] sm:$0xff]
        %v212 = vld [vmem:[#allocation5 + $0xb8] sm:$0xff]
        %v213 = vld [vmem:[#allocation5 + $0xc0] sm:$0xff]
        %v214 = vld [vmem:[#allocation5 + $0xc8] sm:$0xff]
        %v215 = vld [vmem:[#allocation5 + $0xd0] sm:$0xff]
        %v216 = vld [vmem:[#allocation5 + $0xd8] sm:$0xff]
        %v217 = vld [vmem:[#allocation5 + $0xe0] sm:$0xff]
        %v218 = vld [vmem:[#allocation5 + $0xe8] sm:$0xff]
        %v219 = vld [vmem:[#allocation5 + $0xf0] sm:$0xff]
        %v220 = vld [vmem:[#allocation5 + $0xf8] sm:$0xff]
        %v221 = vld [vmem:[#allocation5 + $0x100] sm:$0xff]
        %v222 = vld [vmem:[#allocation5 + $0x108] sm:$0xff]
        %v223 = vld [vmem:[#allocation5 + $0x110] sm:$0xff]
        %v224 = vld [vmem:[#allocation5 + $0x118] sm:$0xff]
        %v225 = vld [vmem:[#allocation5 + $0x120] sm:$0xff]
        %v226 = vld [vmem:[#allocation5 + $0x128] sm:$0xff]
        %v227 = vld [vmem:[#allocation5 + $0x130] sm:$0xff]
        %v228 = vld [vmem:[#allocation5 + $0x138] sm:$0xff]
        %v229 = vld [vmem:[#allocation5 + $0x140] sm:$0xff]
        %v230 = vld [vmem:[#allocation5 + $0x148] sm:$0xff]
        %v231 = vld [vmem:[#allocation5 + $0x150] sm:$0xff]
        %v232 = vld [vmem:[#allocation5 + $0x158] sm:$0xff]
        %v233 = vld [vmem:[#allocation5 + $0x160] sm:$0xff]
        %v234 = vld [vmem:[#allocation5 + $0x168] sm:$0xff]
        %v235 = vld [vmem:[#allocation5 + $0x170] sm:$0xff]
        %v236 = vld [vmem:[#allocation5 + $0x178] sm:$0xff]
        %237 = vmatprep.subr.mxu0 0.0
        %238 = vmatpush1.msra.mxu0 %v189
        %239 = vmatprep.subr.mxu0 0.0
        %240 = vmatpush1.msra.mxu0 %v190
        %241 = vmatprep.subr.mxu0 0.0
        %242 = vmatpush1.msra.mxu0 %v191
        %243 = vmatprep.subr.mxu0 0.0
        %244 = vmatpush1.msra.mxu0 %v192
        %245 = vmatprep.subr.mxu0 0.0
        %246 = vmatpush1.msra.mxu0 %v193
        %247 = vmatprep.subr.mxu0 0.0
        %248 = vmatpush1.msra.mxu0 %v194
        %249 = vmatprep.subr.mxu0 0.0
        %250 = vmatpush1.msra.mxu0 %v195
        %251 = vmatprep.subr.mxu0 0.0
        %252 = vmatpush1.msra.mxu0 %v196
        %253 = vmatprep.subr.mxu0 0.0
        %254 = vmatpush1.msra.mxu0 %v197
        %255 = vmatprep.subr.mxu0 0.0
        %256 = vmatpush1.msra.mxu0 %v198
        %257 = vmatprep.subr.mxu0 0.0
        %258 = vmatpush1.msra.mxu0 %v199
        %259 = vmatprep.subr.mxu0 0.0
        %260 = vmatpush1.msra.mxu0 %v200
        %261 = vmatprep.subr.mxu0 0.0
        %262 = vmatpush1.msra.mxu0 %v201
        %263 = vmatprep.subr.mxu0 0.0
        %264 = vmatpush1.msra.mxu0 %v202
        %265 = vmatprep.subr.mxu0 0.0
        %266 = vmatpush1.msra.mxu0 %v203
        %267 = vmatprep.subr.mxu0 0.0
        %268 = vmatpush1.msra.mxu0 %v204
        %269 = vmatprep.subr.mxu0 0.0
        %270 = vmatpush1.msra.mxu0 %v205
        %271 = vmatprep.subr.mxu0 0.0
        %272 = vmatpush1.msra.mxu0 %v206
        %273 = vmatprep.subr.mxu0 0.0
        %274 = vmatpush1.msra.mxu0 %v207
        %275 = vmatprep.subr.mxu0 0.0
        %276 = vmatpush1.msra.mxu0 %v208
        %277 = vmatprep.subr.mxu0 0.0
        %278 = vmatpush1.msra.mxu0 %v209
        %279 = vmatprep.subr.mxu0 0.0
        %280 = vmatpush1.msra.mxu0 %v210
        %281 = vmatprep.subr.mxu0 0.0
        %282 = vmatpush1.msra.mxu0 %v211
        %283 = vmatprep.subr.mxu0 0.0
        %284 = vmatpush1.msra.mxu0 %v212
        %285 = vmatprep.subr.mxu0 0.0
        %286 = vmatpush1.msra.mxu0 %v213
        %287 = vmatprep.subr.mxu0 0.0
        %288 = vmatpush1.msra.mxu0 %v214
        %289 = vmatprep.subr.mxu0 0.0
        %290 = vmatpush1.msra.mxu0 %v215
        %291 = vmatprep.subr.mxu0 0.0
        %292 = vmatpush1.msra.mxu0 %v216
        %293 = vmatprep.subr.mxu0 0.0
        %294 = vmatpush1.msra.mxu0 %v217
        %295 = vmatprep.subr.mxu0 0.0
        %296 = vmatpush1.msra.mxu0 %v218
        %297 = vmatprep.subr.mxu0 0.0
        %298 = vmatpush1.msra.mxu0 %v219
        %299 = vmatprep.subr.mxu0 0.0
        %300 = vmatpush1.msra.mxu0 %v220
        %301 = vmatprep.mubr.f32.mxu0 %v174
        %302 = vmatmul.mubr.f32.gmra.mrb[0].mxu0 %v182
        %v303 = vpop.f32.mrb[0].mxu0
        %v304 = vadd.f32 0.0, %v303
        %v305 = vpop.f32.mrb[0].mxu0
        %306 = vdwg.mxu0
        %307 = vmatprep.subr.mxu0 0.0
        %308 = vmatpush1.msra.mxu0 %v221
        %309 = vmatprep.subr.mxu0 0.0
        %310 = vmatpush1.msra.mxu0 %v222
        %311 = vmatprep.subr.mxu0 0.0
        %312 = vmatpush1.msra.mxu0 %v223
        %313 = vmatprep.subr.mxu0 0.0
        %314 = vmatpush1.msra.mxu0 %v224
        %315 = vmatprep.subr.mxu0 0.0
        %316 = vmatpush1.msra.mxu0 %v225
        %317 = vmatprep.subr.mxu0 0.0
        %318 = vmatpush1.msra.mxu0 %v226
        %319 = vmatprep.subr.mxu0 0.0
        %320 = vmatpush1.msra.mxu0 %v227
        %321 = vmatprep.subr.mxu0 0.0
        %322 = vmatpush1.msra.mxu0 %v228
        %323 = vmatprep.subr.mxu0 0.0
        %324 = vmatpush1.msra.mxu0 %v229
        %325 = vmatprep.subr.mxu0 0.0
        %326 = vmatpush1.msra.mxu0 %v230
        %327 = vmatprep.subr.mxu0 0.0
        %328 = vmatpush1.msra.mxu0 %v231
        %329 = vmatprep.subr.mxu0 0.0
        %330 = vmatpush1.msra.mxu0 %v232
        %331 = vmatprep.subr.mxu0 0.0
        %332 = vmatpush1.msra.mxu0 %v233
        %333 = vmatprep.subr.mxu0 0.0
        %334 = vmatpush1.msra.mxu0 %v234
        %335 = vmatprep.subr.mxu0 0.0
        %336 = vmatpush1.msra.mxu0 %v235
        %337 = vmatprep.subr.mxu0 0.0
        %338 = vmatpush1.msra.mxu0 %v236
        %339 = vmatprep.subr.mxu0 0.0
        %340 = vmatpush1.msra.mxu0 0.0
        %341 = vmatprep.subr.mxu0 0.0
        %342 = vmatpush1.msra.mxu0 0.0
        %343 = vmatprep.subr.mxu0 0.0
        %344 = vmatpush1.msra.mxu0 0.0
        %345 = vmatprep.subr.mxu0 0.0
        %346 = vmatpush1.msra.mxu0 0.0
        %347 = vmatprep.subr.mxu0 0.0
        %348 = vmatpush1.msra.mxu0 0.0
        %349 = vmatprep.subr.mxu0 0.0
        %350 = vmatpush1.msra.mxu0 0.0
        %351 = vmatprep.subr.mxu0 0.0
        %352 = vmatpush1.msra.mxu0 0.0
        %353 = vmatprep.subr.mxu0 0.0
        %354 = vmatpush1.msra.mxu0 0.0
        %355 = vmatprep.subr.mxu0 0.0
        %356 = vmatpush1.msra.mxu0 0.0
        %357 = vmatprep.subr.mxu0 0.0
        %358 = vmatpush1.msra.mxu0 0.0
        %359 = vmatprep.subr.mxu0 0.0
        %360 = vmatpush1.msra.mxu0 0.0
        %361 = vmatprep.subr.mxu0 0.0
        %362 = vmatpush1.msra.mxu0 0.0
        %363 = vmatprep.subr.mxu0 0.0
        %364 = vmatpush1.msra.mxu0 0.0
        %365 = vmatprep.subr.mxu0 0.0
        %366 = vmatpush1.msra.mxu0 0.0
        %367 = vmatprep.subr.mxu0 0.0
        %368 = vmatpush1.msra.mxu0 0.0
        %369 = vmatprep.subr.mxu0 0.0
        %370 = vmatpush1.msra.mxu0 0.0
        %371 = vmatprep.mubr.f32.mxu0 0.0
        %372 = vmatmul.mubr.f32.gmra.mrb[0].mxu0 %v188
        %v373 = vpop.f32.mrb[0].mxu0
        %v374 = vadd.f32 %v304, %v373
        %v375 = vpop.f32.mrb[0].mxu0
        %376 = vdwg.mxu0
        %377 = vst [vmem:[%s173] sm:$0xff] %v374
        %s378 = sand.u32 %s75, 1
        %s379 = scalar_lea.sflag [#allocation4], %s378
        %s380 = sand.u32 %s75, 1
        %s381 = smul.addr %s380, 8
        %s382 = scalar_lea.vmem [#allocation7], %s381
        // Predicated region
        $region37: #{tpu_custom_call.1} parent=27 // pred_check
          %p383 = pneg %p85
        $region38: #{tpu_custom_call.1} parent=27 // pred_check_branch
          %385 = sbr.rel (%p383) target = $region40
        $region39: #{tpu_custom_call.1} parent=27 // pred_region
          %s387 = ssub.s32 128, 128
          %388 = vsyncadd %s379, %s387
          %s389 = smul.addr %s20, 128
          %s390 = scalar_lea.hbm %s2, %s389
          %s392 = sshll.u32 %s382, 4
          %s393 = int_to_ptr.vmem [resolvable:$true] %s392
          %395 = dma.vmem_to_hbm [thread:$0]  %s393, 128, %s390, %s379
        $region40: #{tpu_custom_call.1} parent=27 // pred_fallthru
          _
      $region28: #{tpu_custom_call.1} parent=5 // pred_fallthru
        _
      %p396 = scmp.le.s32.totalorder 2, %s15
      // Predicated region
      $region41: #{tpu_custom_call.1} parent=5 // pred_check
        %p397 = pneg %p396
      $region42: #{tpu_custom_call.1} parent=5 // pred_check_branch
        %399 = sbr.rel (%p397) target = $region44
      $region43: #{tpu_custom_call.1} parent=5 // pred_region
        %s400 = ssub.s32 %s15, 2
        // Predicated region
        $region45: #{tpu_custom_call.1} parent=43 // pred_check
          %p401 = pneg %p91
        $region46: #{tpu_custom_call.1} parent=43 // pred_check_branch
          %403 = sbr.rel (%p401) target = $region48
        $region47: #{tpu_custom_call.1} parent=43 // pred_region
          %s404 = sand.u32 %s76, 1
          %s405 = scalar_lea.sflag [#allocation4], %s404
          %s406 = sand.u32 %s76, 1
          %s407 = smul.addr %s406, 8
          %s408 = scalar_lea.vmem [#allocation7], %s407
          %409 = dma.done %s405, 128
        $region48: #{tpu_custom_call.1} parent=43 // pred_fallthru
          _
      $region44: #{tpu_custom_call.1} parent=5 // pred_fallthru
        _
    $region6: #{tpu_custom_call.1} parent=1 // loop_footer
      %s19 = sadd.s32 1, %s15
    $region7: #{tpu_custom_call.1} parent=1 // loop_footer_branch
      %14 = sbr.rel target = $region3
    $region8: #{tpu_custom_call.1} parent=1 // loop_exit
      _
    %410 = vsyncpa [#allocation3], 1
    %s411 = scalar_lea.sflag [#allocation3], 1
    %412 = vsyncpa %s411, 1
    %413 = vsyncpa [#allocation6], 1
    %414 = vsyncpa [#allocation4], 1
    %s415 = scalar_lea.sflag [#allocation4], 1
    %416 = vsyncpa %s415, 1

</llo_original>
